<compile_context>
chip_gen: v6e
topology: v6e:2x2x1
jax: 0.10.0
libtpu: 0.0.40
codegen_flags: <defaults>
</compile_context>

<pallas_src>
import functools

import jax
import jax.numpy as jnp
import numpy as np
from jax.experimental import pallas as pl
from jax.experimental.pallas import tpu as pltpu


def qnetwork_kernel(x_ref, w1_ref, b1_ref, w2_ref, b2_ref, o_ref):
    # fc1: cast the streamed f32 activations to bf16 on the VPU, then
    # (TB, D_in)bf16 @ (D_in, H_p)bf16 -> f32 accumulation on the MXU.
    x = x_ref[...].astype(jnp.bfloat16)
    h = jnp.dot(x, w1_ref[...], preferred_element_type=jnp.float32)
    # Bias-add + ReLU in f32 on the VPU (b1 kept in f32).
    h = jnp.maximum(h + b1_ref[...], 0.0)
    # fc2: second MXU pass in bf16, f32 accumulation.
    out = jnp.dot(h.astype(jnp.bfloat16), w2_ref[...],
                  preferred_element_type=jnp.float32)
    o_ref[...] = (out + b2_ref[...]).astype(o_ref.dtype)


def _round_up(n, m):
    return ((n + m - 1) // m) * m


# Lane granularity for padded hidden/output feature dims (128 = vreg lane
# width). Bump to 256 on v6e/v7x if hidden_dim is scaled to >=256 so the
# 2x256x256 MXU is fed full-width — irrelevant at these tiny sizes.
_LANE = 128
# Sublane granularity of the batch tile: 16 so bf16 output blocks are
# natively packed (also fine for f32).
_SUBLANE = 16
# Split the batch into >=2 grid steps once B reaches this, so the "parallel"
# grid axis can shard across v7x's two TensorCores (no-op on v5e/v6e).
_MIN_SPLIT_B = 128


def prepare_qnetwork_params(w1, b1, w2, b2):
    """One-time pad + bf16 cast of the Linear params (call once, reuse)."""
    d_in, h_dim = w1.shape
    d_out = w2.shape[1]
    h_p = _round_up(h_dim, _LANE)
    d_out_p = _round_up(d_out, _LANE)

    # Zero-padded rows/cols contribute exactly 0 through both matmuls.
    w1_p = jnp.zeros((d_in, h_p), jnp.bfloat16).at[:, :h_dim].set(
        w1.astype(jnp.bfloat16))
    b1_p = jnp.zeros((1, h_p), jnp.float32).at[:, :h_dim].set(
        b1.astype(jnp.float32).reshape(1, -1))
    w2_p = jnp.zeros((h_p, d_out_p), jnp.bfloat16).at[:h_dim, :d_out].set(
        w2.astype(jnp.bfloat16))
    b2_p = jnp.zeros((1, d_out_p), jnp.float32).at[:, :d_out].set(
        b2.astype(jnp.float32).reshape(1, -1))
    return w1_p, b1_p, w2_p, b2_p


def _choose_batch_tile(batch, block_b):
    n_tiles = pl.cdiv(batch, block_b)
    if n_tiles < 2 and batch >= _MIN_SPLIT_B:
        n_tiles = 2  # let ("parallel",) actually use both v7x TensorCores
    # Near-exact tiles so the ragged last block wastes almost nothing.
    return max(_SUBLANE, _round_up(pl.cdiv(batch, n_tiles), _SUBLANE))


def qnetwork_forward(x, w1_p, b1_p, w2_p, b2_p, *, d_out, block_b=512,
                     out_dtype=jnp.bfloat16):
    """relu(x @ w1 + b1) @ w2 + b2 with prepared (padded, bf16) params."""
    batch, d_in = x.shape
    h_p = w1_p.shape[1]
    d_out_p = w2_p.shape[1]

    tb = _choose_batch_tile(batch, block_b)
    grid = (pl.cdiv(batch, tb),)

    cost = pl.CostEstimate(
        flops=2 * batch * (d_in * h_p + h_p * d_out_p),
        transcendentals=0,
        bytes_accessed=(batch * d_in * x.dtype.itemsize
                        + w1_p.size * 2 + b1_p.size * 4
                        + w2_p.size * 2 + b2_p.size * 4
                        + batch * d_out_p * np.dtype(out_dtype).itemsize),
    )

    out_p = pl.pallas_call(
        qnetwork_kernel,
        out_shape=jax.ShapeDtypeStruct((batch, d_out_p), out_dtype),
        grid=grid,
        in_specs=[
            # Activations: streamed unpadded per batch tile (last dim equals
            # the full array dim so no lane padding needed); bf16 cast is done
            # in-kernel. Final block may be ragged — OOB rows only feed OOB
            # output rows, which are masked on write.
            pl.BlockSpec((tb, d_in), lambda i: (i, 0)),
            # Weights / biases: constant block index -> VMEM-resident, never
            # re-DMA'd across grid steps.
            pl.BlockSpec((d_in, h_p), lambda i: (0, 0)),
            pl.BlockSpec((1, h_p), lambda i: (0, 0)),
            pl.BlockSpec((h_p, d_out_p), lambda i: (0, 0)),
            pl.BlockSpec((1, d_out_p), lambda i: (0, 0)),
        ],
        # Lane-dense (multiple-of-128) output tile -> unmasked vst.
        out_specs=pl.BlockSpec((tb, d_out_p), lambda i: (i, 0)),
        compiler_params=pltpu.CompilerParams(
            dimension_semantics=("parallel",),
            # If hidden_dim is scaled up and the scoped VMEM default trips
            # (16 MiB v5e / 32 MiB v6e,v7x), raise vmem_limit_bytes here
            # rather than shrinking tb below ~256.
        ),
        cost_estimate=cost,
    )(x, w1_p, b1_p, w2_p, b2_p)

    # Slice padded output lanes off. A consumer that accepts the lane-padded
    # (batch, d_out_p) block can skip this and save one HBM round trip.
    return out_p[:, :d_out]


def make_qnetwork(w1, b1, w2, b2, *, block_b=512, out_dtype=jnp.bfloat16):
    """Pad/cast params once and return a jitted forward(x) closure."""
    d_out = w2.shape[1]
    w1_p, b1_p, w2_p, b2_p = prepare_qnetwork_params(w1, b1, w2, b2)
    fwd = functools.partial(qnetwork_forward, d_out=d_out, block_b=block_b,
                            out_dtype=out_dtype)

    @jax.jit
    def forward(x):
        return fwd(x, w1_p, b1_p, w2_p, b2_p)

    return forward


def init_linear_params(key, in_features, out_features):
    # Mirrors torch.nn.Linear default init: U(-1/sqrt(fan_in), 1/sqrt(fan_in)).
    kw, kb = jax.random.split(key)
    bound = 1.0 / jnp.sqrt(jnp.float32(in_features))
    w = jax.random.uniform(kw, (in_features, out_features), jnp.float32,
                           -bound, bound)
    b = jax.random.uniform(kb, (1, out_features), jnp.float32, -bound, bound)
    return w, b


if __name__ == "__main__":
    input_dim, hidden_dim, output_dim = 16, 32, 4
    batch = 2

    key = jax.random.PRNGKey(0)
    k_x, k_fc1, k_fc2 = jax.random.split(key, 3)

    x = jax.random.normal(k_x, (batch, input_dim), jnp.float32)
    w1, b1 = init_linear_params(k_fc1, input_dim, hidden_dim)
    w2, b2 = init_linear_params(k_fc2, hidden_dim, output_dim)

    forward = make_qnetwork(w1, b1, w2, b2)   # params padded/cast exactly once
    out = jax.block_until_ready(forward(x))
    assert out.shape == (batch, output_dim)
    assert out.dtype == jnp.bfloat16

    out_f32 = out.astype(jnp.float32)

    # Reference with the same bf16 operand casting as the kernel (MXU path),
    # f32 accumulation and f32 epilogues.
    h_ref = jnp.maximum(
        jnp.dot(x.astype(jnp.bfloat16), w1.astype(jnp.bfloat16),
                preferred_element_type=jnp.float32) + b1, 0.0)
    ref_bf16 = jnp.dot(
        h_ref.astype(jnp.bfloat16), w2.astype(jnp.bfloat16),
        preferred_element_type=jnp.float32) + b2
    assert jnp.allclose(out_f32, ref_bf16, atol=2e-2, rtol=2e-2)

    # Loose sanity check against the pure-f32 reference (bf16 quantization).
    ref_f32 = jnp.maximum(x @ w1 + b1, 0.0) @ w2 + b2
    assert jnp.allclose(out_f32, ref_f32, atol=1e-1, rtol=1e-1)

    print("KERNEL_OK")
</pallas_src>

<mosaic_0001>
module attributes {stable_mosaic.version = 11 : i64} {
  func.func @qnetwork_kernel(%arg0: i32, %arg1: memref<16x16xf32, #tpu.memory_space<vmem>>, %arg2: memref<16x128xbf16, #tpu.memory_space<vmem>>, %arg3: memref<1x128xf32, #tpu.memory_space<vmem>>, %arg4: memref<128x128xbf16, #tpu.memory_space<vmem>>, %arg5: memref<1x128xf32, #tpu.memory_space<vmem>>, %arg6: memref<16x128xbf16, #tpu.memory_space<vmem>>) attributes {dimension_semantics = [#tpu.dimension_semantics<parallel>], iteration_bounds = array<i64: 1>, scalar_prefetch = 0 : i64, scratch_operands = 0 : i64, tpu.core_type = #tpu.core_type<tc>, window_params = [{transform_indices = @transform_0, window_bounds = array<i64: 16, 16>}, {pipeline_mode = #tpu.pipeline_mode<synchronous>, transform_indices = @transform_1, window_bounds = array<i64: 16, 128>}, {pipeline_mode = #tpu.pipeline_mode<synchronous>, transform_indices = @transform_2, window_bounds = array<i64: 1, 128>}, {pipeline_mode = #tpu.pipeline_mode<synchronous>, transform_indices = @transform_3, window_bounds = array<i64: 128, 128>}, {pipeline_mode = #tpu.pipeline_mode<synchronous>, transform_indices = @transform_4, window_bounds = array<i64: 1, 128>}, {transform_indices = @transform_5, window_bounds = array<i64: 16, 128>}]} {
    %c0 = arith.constant 0 : index
    %c0_0 = arith.constant 0 : index
    %0 = vector.load %arg1[%c0, %c0_0] : memref<16x16xf32, #tpu.memory_space<vmem>>, vector<16x16xf32>
    %1 = arith.truncf %0 : vector<16x16xf32> to vector<16x16xbf16>
    %c0_1 = arith.constant 0 : index
    %c0_2 = arith.constant 0 : index
    %2 = vector.load %arg2[%c0_1, %c0_2] : memref<16x128xbf16, #tpu.memory_space<vmem>>, vector<16x128xbf16>
    %cst = arith.constant dense<0.000000e+00> : vector<16x128xf32>
    %3 = tpu.matmul %1, %2, %cst {dimension_numbers = #tpu.dot_dimension_numbers<[1], [0], [0], [1], [0, 0, 1, 1], [], []>} : vector<16x16xbf16>, vector<16x128xbf16>, vector<16x128xf32> -> vector<16x128xf32>
    %c0_3 = arith.constant 0 : index
    %c0_4 = arith.constant 0 : index
    %4 = vector.load %arg3[%c0_3, %c0_4] : memref<1x128xf32, #tpu.memory_space<vmem>>, vector<1x128xf32>
    %5 = vector.broadcast %4 : vector<1x128xf32> to vector<16x128xf32>
    %6 = arith.addf %3, %5 : vector<16x128xf32>
    %cst_5 = arith.constant 0.000000e+00 : f32
    %7 = vector.broadcast %cst_5 : f32 to vector<16x128xf32>
    %8 = arith.maximumf %6, %7 : vector<16x128xf32>
    %9 = arith.truncf %8 : vector<16x128xf32> to vector<16x128xbf16>
    %c0_6 = arith.constant 0 : index
    %c0_7 = arith.constant 0 : index
    %10 = vector.load %arg4[%c0_6, %c0_7] : memref<128x128xbf16, #tpu.memory_space<vmem>>, vector<128x128xbf16>
    %cst_8 = arith.constant dense<0.000000e+00> : vector<16x128xf32>
    %11 = tpu.matmul %9, %10, %cst_8 {dimension_numbers = #tpu.dot_dimension_numbers<[1], [0], [0], [1], [0, 0, 1, 1], [], []>} : vector<16x128xbf16>, vector<128x128xbf16>, vector<16x128xf32> -> vector<16x128xf32>
    %c0_9 = arith.constant 0 : index
    %c0_10 = arith.constant 0 : index
    %12 = vector.load %arg5[%c0_9, %c0_10] : memref<1x128xf32, #tpu.memory_space<vmem>>, vector<1x128xf32>
    %13 = vector.broadcast %12 : vector<1x128xf32> to vector<16x128xf32>
    %14 = arith.addf %11, %13 : vector<16x128xf32>
    %15 = arith.truncf %14 : vector<16x128xf32> to vector<16x128xbf16>
    %c0_11 = arith.constant 0 : index
    %c0_12 = arith.constant 0 : index
    %16 = vector.load %arg6[%c0_11, %c0_12] : memref<16x128xbf16, #tpu.memory_space<vmem>>, vector<16x128xbf16>
    tpu.vector_store %arg6[%c0_11, %c0_12], %15 {strides = array<i32>} : memref<16x128xbf16, #tpu.memory_space<vmem>>, vector<16x128xbf16>,
    return
  }
  func.func @transform_0(%arg0: i32) -> (i32, i32) {
    %c0_i32 = arith.constant 0 : i32
    %c0_i32_0 = arith.constant 0 : i32
    return %arg0, %c0_i32 : i32, i32
  }
  func.func @transform_1(%arg0: i32) -> (i32, i32) {
    %c0_i32 = arith.constant 0 : i32
    %c0_i32_0 = arith.constant 0 : i32
    %c0_i32_1 = arith.constant 0 : i32
    return %c0_i32, %c0_i32_0 : i32, i32
  }
  func.func @transform_2(%arg0: i32) -> (i32, i32) {
    %c0_i32 = arith.constant 0 : i32
    %c0_i32_0 = arith.constant 0 : i32
    %c0_i32_1 = arith.constant 0 : i32
    return %c0_i32, %c0_i32_0 : i32, i32
  }
  func.func @transform_3(%arg0: i32) -> (i32, i32) {
    %c0_i32 = arith.constant 0 : i32
    %c0_i32_0 = arith.constant 0 : i32
    %c0_i32_1 = arith.constant 0 : i32
    return %c0_i32, %c0_i32_0 : i32, i32
  }
  func.func @transform_4(%arg0: i32) -> (i32, i32) {
    %c0_i32 = arith.constant 0 : i32
    %c0_i32_0 = arith.constant 0 : i32
    %c0_i32_1 = arith.constant 0 : i32
    return %c0_i32, %c0_i32_0 : i32, i32
  }
  func.func @transform_5(%arg0: i32) -> (i32, i32) {
    %c0_i32 = arith.constant 0 : i32
    %c0_i32_0 = arith.constant 0 : i32
    return %arg0, %c0_i32 : i32, i32
  }
}

</mosaic_0001>

<llo_original>
// kernel: forward.1
$region0: #{forward.1}
  #allocation0 [shape = 'u32[]', space=smem, size = 0x4, offset = 0x4, fixed_abs, tag = 'smem constant byte address 0x4 - core index']
  #allocation1 [shape = 'u32[144,128]{1,0:T(1,128)}', space=vmem, size = 0x12000, scoped, tag = 'internal scratch']
  %s0 = inlined_call_operand.hbm [shape: f32[2,16], index: 0, kind: input, shape index: {}]
  %s1 = inlined_call_operand.hbm [shape: bf16[16,128], index: 1, kind: input, shape index: {}]
  %s2 = inlined_call_operand.vmem [shape: f32[1,128], index: 2, kind: input, shape index: {}]
  %s3 = inlined_call_operand.hbm [shape: bf16[128,128], index: 3, kind: input, shape index: {}]
  %s4 = inlined_call_operand.vmem [shape: f32[1,128], index: 4, kind: input, shape index: {}]
  %s5 = inlined_call_operand.hbm [shape: bf16[2,128], index: 5, kind: output, shape index: {}]
  %s6 = sld [smem:[#allocation0]]
  $region42: #{forward.1} parent=0
    _
  %s8 = ssub.s32 1, %s6
  %s9 = scalar_select 0, %s8, %s6
  $region1: #{forward.1} parent=0
    #allocation2 [shape = 'u8[8192]{0}', space=vmem, size = 0x2000, scoped, tag = 'input window, operand 0, single buffered']
    #allocation3 [shape = 's32[1]{0}', space=sflag, size = 0x4, scoped, tag = 'scoped memory for forward.1']
    #allocation4 [shape = 's32[1]{0}', space=sflag, size = 0x4, scoped, tag = 'scoped memory for forward.1']
    #allocation5 [shape = 'u8[4096]{0}', space=vmem, size = 0x1000, scoped, tag = 'input window, operand 1, single buffered']
    #allocation6 [shape = 's32[1]{0}', space=sflag, size = 0x4, scoped, tag = 'scoped memory for forward.1']
    #allocation7 [shape = 'u8[32768]{0}', space=vmem, size = 0x8000, scoped, tag = 'input window, operand 3, single buffered']
    #allocation8 [shape = 'u8[4096]{0}', space=vmem, size = 0x1000, scoped, tag = 'output window, operand 0, single buffered']
    %10 = vsyncpa [#allocation3], 0
    %11 = vsyncpa [#allocation6], 0
    %12 = vsyncpa [#allocation4], 0
    // Predicated region
    $region2: #{forward.1} parent=1 // pred_check
      _
    $region3: #{forward.1} parent=1 // pred_check_branch
      %14 = sbr.rel (0) target = $region5
    $region4: #{forward.1} parent=1 // pred_region
      %s16 = ssub.s32 256, 32
      %17 = vsyncadd [#allocation3], %s16
      %s18 = sshll.u32 [#allocation2], 4
      %s19 = int_to_ptr.vmem [resolvable:$true] %s18
      %24 = dma.hbm_to_vmem [thread:$0]  %s0, 32, %s19, [#allocation3], 32, 32, 2
    $region5: #{forward.1} parent=1 // pred_fallthru
      _
    // Predicated region
    $region6: #{forward.1} parent=1 // pred_check
      _
    $region7: #{forward.1} parent=1 // pred_check_branch
      %26 = sbr.rel (0) target = $region9
    $region8: #{forward.1} parent=1 // pred_region
      %s28 = ssub.s32 128, 128
      %29 = vsyncadd [#allocation6], %s28
      %s30 = sshll.u32 [#allocation5], 4
      %s31 = int_to_ptr.vmem [resolvable:$true] %s30
      %36 = dma.hbm_to_vmem [thread:$0]  %s1, 128, %s31, [#allocation6], 64, 64, 4
    $region9: #{forward.1} parent=1 // pred_fallthru
      _
    // Predicated region
    $region10: #{forward.1} parent=1 // pred_check
      _
    $region11: #{forward.1} parent=1 // pred_check_branch
      %38 = sbr.rel (0) target = $region13
    $region12: #{forward.1} parent=1 // pred_region
      _
    $region13: #{forward.1} parent=1 // pred_fallthru
      _
    // Predicated region
    $region14: #{forward.1} parent=1 // pred_check
      _
    $region15: #{forward.1} parent=1 // pred_check_branch
      %40 = sbr.rel (0) target = $region17
    $region16: #{forward.1} parent=1 // pred_region
      %s42 = ssub.s32 1024, 1024
      %43 = vsyncadd [#allocation6], %s42
      %s44 = sshll.u32 [#allocation7], 4
      %s45 = int_to_ptr.vmem [resolvable:$true] %s44
      %50 = dma.hbm_to_vmem [thread:$0]  %s3, 1024, %s45, [#allocation6], 64, 64, 4
    $region17: #{forward.1} parent=1 // pred_fallthru
      _
    // Predicated region
    $region18: #{forward.1} parent=1 // pred_check
      _
    $region19: #{forward.1} parent=1 // pred_check_branch
      %52 = sbr.rel (0) target = $region21
    $region20: #{forward.1} parent=1 // pred_region
      _
    $region21: #{forward.1} parent=1 // pred_fallthru
      _
    // Predicated region
    $region22: #{forward.1} parent=1 // pred_check
      _
    $region23: #{forward.1} parent=1 // pred_check_branch
      %54 = sbr.rel (0) target = $region25
    $region24: #{forward.1} parent=1 // pred_region
      %55 = dma.done [#allocation3], 256
    $region25: #{forward.1} parent=1 // pred_fallthru
      _
    // Predicated region
    $region26: #{forward.1} parent=1 // pred_check
      _
    $region27: #{forward.1} parent=1 // pred_check_branch
      %57 = sbr.rel (0) target = $region29
    $region28: #{forward.1} parent=1 // pred_region
      %58 = dma.done [#allocation6], 128
    $region29: #{forward.1} parent=1 // pred_fallthru
      _
    // Predicated region
    $region30: #{forward.1} parent=1 // pred_check
      _
    $region31: #{forward.1} parent=1 // pred_check_branch
      %60 = sbr.rel (0) target = $region33
    $region32: #{forward.1} parent=1 // pred_region
      %61 = dma.done [#allocation6], 1024
    $region33: #{forward.1} parent=1 // pred_fallthru
      _
    %v63 = vld [vmem:[#allocation2] sm:$0xff]
    %v64 = vld [vmem:[#allocation2 + $0x8] sm:$0xff]
    %v65 = vpack.c.bf16 %v64, %v63
    %v66 = vld [vmem:[#allocation5] sm:$0xf]
    %v67 = vld [vmem:[#allocation5 + $0x4] sm:$0xf]
    %v68 = vld [vmem:[%s2] sm:$0x1]
    %v70 = vlaneseq
    %v71 = vshrl.u32 %v70, 7
    %v72 = vsub.s32 0, %v71
    %v73 = vrot.slane %v68, %v72
    %v77 = vunpack.c.l.b16 %v66
    %v78 = vunpack.c.l.b16 %v67
    %v79 = vpack.c.b16 %v78, %v77
    %vm81 = vcmask 130048
    %v83 = vsel %vm81, %v65, 0
    %85 = vmatprep.subr.bf16.mxu0 0
    %86 = vmatpush1.bf16.msra.mxu0 0
    %87 = vmatprep.subr.bf16.mxu0 0
    %88 = vmatpush1.bf16.msra.mxu0 0
    %89 = vmatprep.subr.bf16.mxu0 0
    %90 = vmatpush1.bf16.msra.mxu0 0
    %91 = vmatprep.subr.bf16.mxu0 0
    %92 = vmatpush1.bf16.msra.mxu0 0
    %93 = vmatprep.subr.bf16.mxu0 0
    %94 = vmatpush1.bf16.msra.mxu0 0
    %95 = vmatprep.subr.bf16.mxu0 0
    %96 = vmatpush1.bf16.msra.mxu0 0
    %97 = vmatprep.subr.bf16.mxu0 0
    %98 = vmatpush1.bf16.msra.mxu0 0
    %99 = vmatprep.subr.bf16.mxu0 0
    %100 = vmatpush1.bf16.msra.mxu0 %v79
    %101 = vmatprep.subr.bf16.mxu0 0
    %102 = vmatpush2.bf16.msra.mxu0 0
    %103 = vmatprep.subr.bf16.mxu0 0
    %104 = vmatpush2.bf16.msra.mxu0 0
    %105 = vmatprep.subr.bf16.mxu0 0
    %106 = vmatpush2.bf16.msra.mxu0 0
    %107 = vmatprep.subr.bf16.mxu0 0
    %108 = vmatpush2.bf16.msra.mxu0 0
    %109 = vmatprep.subr.bf16.mxu0 0
    %110 = vmatpush2.bf16.msra.mxu0 0
    %111 = vmatprep.subr.bf16.mxu0 0
    %112 = vmatpush2.bf16.msra.mxu0 0
    %113 = vmatprep.subr.bf16.mxu0 0
    %114 = vmatpush2.bf16.msra.mxu0 0
    %115 = vmatprep.subr.bf16.mxu0 0
    %116 = vmatpush2.bf16.msra.mxu0 0
    %117 = vmatprep.mubr.bf16.mxu0 0
    %118 = vmatmul.mubr.bf16.gmra.mxu0 %v83
    %v119 = vpop.f32.mrf.mxu0
    %v120 = vadd.f32 %v73, %v119
    %v121 = vpop.f32.mrf.mxu0
    %v122 = vpop.f32.mrf.mxu0
    %v123 = vadd.f32 %v73, %v122
    %v124 = vpop.f32.mrf.mxu0
    %125 = vdwg.mxu0
    %v126 = vmax.f32 %v120, 0.0
    %v127 = vmax.f32 %v123, 0.0
    %v128 = vpack.c.bf16 %v127, %v126
    %v129 = vld [vmem:[#allocation7] sm:$0xf]
    %v130 = vld [vmem:[#allocation7 + $0x4] sm:$0xf]
    %v131 = vld [vmem:[#allocation7 + $0x8] sm:$0xf]
    %v132 = vld [vmem:[#allocation7 + $0xc] sm:$0xf]
    %v133 = vld [vmem:[#allocation7 + $0x10] sm:$0xf]
    %v134 = vld [vmem:[#allocation7 + $0x14] sm:$0xf]
    %v135 = vld [vmem:[#allocation7 + $0x18] sm:$0xf]
    %v136 = vld [vmem:[#allocation7 + $0x1c] sm:$0xf]
    %v137 = vld [vmem:[#allocation7 + $0x20] sm:$0xf]
    %v138 = vld [vmem:[#allocation7 + $0x24] sm:$0xf]
    %v139 = vld [vmem:[#allocation7 + $0x28] sm:$0xf]
    %v140 = vld [vmem:[#allocation7 + $0x2c] sm:$0xf]
    %v141 = vld [vmem:[#allocation7 + $0x30] sm:$0xf]
    %v142 = vld [vmem:[#allocation7 + $0x34] sm:$0xf]
    %v143 = vld [vmem:[#allocation7 + $0x38] sm:$0xf]
    %v144 = vld [vmem:[#allocation7 + $0x3c] sm:$0xf]
    %v145 = vld [vmem:[%s4] sm:$0x1]
    %v147 = vlaneseq
    %v148 = vshrl.u32 %v147, 7
    %v149 = vsub.s32 0, %v148
    %v150 = vrot.slane %v145, %v149
    %v168 = vunpack.c.l.b16 %v129
    %v169 = vunpack.c.l.b16 %v130
    %v170 = vunpack.c.l.b16 %v131
    %v171 = vunpack.c.l.b16 %v132
    %v172 = vunpack.c.l.b16 %v133
    %v173 = vunpack.c.l.b16 %v134
    %v174 = vunpack.c.l.b16 %v135
    %v175 = vunpack.c.l.b16 %v136
    %v176 = vunpack.c.l.b16 %v137
    %v177 = vunpack.c.l.b16 %v138
    %v178 = vunpack.c.l.b16 %v139
    %v179 = vunpack.c.l.b16 %v140
    %v180 = vunpack.c.l.b16 %v141
    %v181 = vunpack.c.l.b16 %v142
    %v182 = vunpack.c.l.b16 %v143
    %v183 = vunpack.c.l.b16 %v144
    %v184 = vpack.c.b16 %v169, %v168
    %v185 = vpack.c.b16 %v171, %v170
    %v186 = vpack.c.b16 %v173, %v172
    %v187 = vpack.c.b16 %v175, %v174
    %v188 = vpack.c.b16 %v177, %v176
    %v189 = vpack.c.b16 %v179, %v178
    %v190 = vpack.c.b16 %v181, %v180
    %v191 = vpack.c.b16 %v183, %v182
    %200 = vmatprep.subr.bf16.mxu0 0
    %201 = vmatpush1.bf16.msra.mxu0 %v191
    %202 = vmatprep.subr.bf16.mxu0 0
    %203 = vmatpush1.bf16.msra.mxu0 %v190
    %204 = vmatprep.subr.bf16.mxu0 0
    %205 = vmatpush1.bf16.msra.mxu0 %v189
    %206 = vmatprep.subr.bf16.mxu0 0
    %207 = vmatpush1.bf16.msra.mxu0 %v188
    %208 = vmatprep.subr.bf16.mxu0 0
    %209 = vmatpush1.bf16.msra.mxu0 %v187
    %210 = vmatprep.subr.bf16.mxu0 0
    %211 = vmatpush1.bf16.msra.mxu0 %v186
    %212 = vmatprep.subr.bf16.mxu0 0
    %213 = vmatpush1.bf16.msra.mxu0 %v185
    %214 = vmatprep.subr.bf16.mxu0 0
    %215 = vmatpush1.bf16.msra.mxu0 %v184
    %216 = vmatprep.subr.bf16.mxu0 0
    %217 = vmatpush2.bf16.msra.mxu0 0
    %218 = vmatprep.subr.bf16.mxu0 0
    %219 = vmatpush2.bf16.msra.mxu0 0
    %220 = vmatprep.subr.bf16.mxu0 0
    %221 = vmatpush2.bf16.msra.mxu0 0
    %222 = vmatprep.subr.bf16.mxu0 0
    %223 = vmatpush2.bf16.msra.mxu0 0
    %224 = vmatprep.subr.bf16.mxu0 0
    %225 = vmatpush2.bf16.msra.mxu0 0
    %226 = vmatprep.subr.bf16.mxu0 0
    %227 = vmatpush2.bf16.msra.mxu0 0
    %228 = vmatprep.subr.bf16.mxu0 0
    %229 = vmatpush2.bf16.msra.mxu0 0
    %230 = vmatprep.subr.bf16.mxu0 0
    %231 = vmatpush2.bf16.msra.mxu0 0
    %232 = vmatprep.mubr.bf16.mxu0 0
    %233 = vmatmul.mubr.bf16.gmra.mxu0 %v128
    %v234 = vpop.f32.mrf.mxu0
    %v235 = vadd.f32 %v150, %v234
    %v236 = vpop.f32.mrf.mxu0
    %v237 = vpop.f32.mrf.mxu0
    %v238 = vadd.f32 %v150, %v237
    %v239 = vpop.f32.mrf.mxu0
    %240 = vdwg.mxu0
    %v241 = vpack.c.bf16 %v238, %v235
    %v243 = vcombine.high %v241, %v241
    %v245 = vunpack.c.l.s4 1966171168
    %v246 = vunpack.c.0.s8 %v245
    %v247 = vlaneseq
    %v248 = vshrl.u32 %v247, 7
    %v249 = vsub.s32 %v246, %v248
    %v250 = vrot.slane %v241, %v249
    %v252 = vunpack.c.l.s4 1966171168
    %v253 = vunpack.c.0.s8 %v252
    %v254 = vlaneseq
    %v255 = vshrl.u32 %v254, 7
    %v256 = vsub.s32 %v253, %v255
    %v257 = vrot.slane %v243, %v256
    %v258 = vcombine.high %v250, %v250
    %v259 = vcombine.high %v257, %v257
    %v261 = vunpack.c.l.s4 1966171168
    %v262 = vunpack.c.0.s8 %v261
    %v263 = vlaneseq
    %v264 = vshrl.u32 %v263, 7
    %v265 = vsub.s32 %v262, %v264
    %v266 = vrot.slane %v250, %v265
    %v268 = vunpack.c.l.s4 1966171168
    %v269 = vunpack.c.0.s8 %v268
    %v270 = vlaneseq
    %v271 = vshrl.u32 %v270, 7
    %v272 = vsub.s32 %v269, %v271
    %v273 = vrot.slane %v257, %v272
    %v275 = vunpack.c.l.s4 1966171168
    %v276 = vunpack.c.0.s8 %v275
    %v277 = vlaneseq
    %v278 = vshrl.u32 %v277, 7
    %v279 = vsub.s32 %v276, %v278
    %v280 = vrot.slane %v258, %v279
    %v282 = vunpack.c.l.s4 1966171168
    %v283 = vunpack.c.0.s8 %v282
    %v284 = vlaneseq
    %v285 = vshrl.u32 %v284, 7
    %v286 = vsub.s32 %v283, %v285
    %v287 = vrot.slane %v259, %v286
    %v288 = vcombine.high %v266, %v266
    %v289 = vcombine.high %v273, %v273
    %v290 = vcombine.high %v280, %v280
    %v291 = vcombine.high %v287, %v287
    %300 = vst [vmem:[#allocation8] sm:$0x1] %v266
    %301 = vst [vmem:[#allocation8 + $0x1] sm:$0x1] %v280
    %302 = vst [vmem:[#allocation8 + $0x2] sm:$0x1] %v288
    %303 = vst [vmem:[#allocation8 + $0x3] sm:$0x1] %v290
    %304 = vst [vmem:[#allocation8 + $0x4] sm:$0x1] %v273
    %305 = vst [vmem:[#allocation8 + $0x5] sm:$0x1] %v287
    %306 = vst [vmem:[#allocation8 + $0x6] sm:$0x1] %v289
    %307 = vst [vmem:[#allocation8 + $0x7] sm:$0x1] %v291
    // Predicated region
    $region34: #{forward.1} parent=1 // pred_check
      _
    $region35: #{forward.1} parent=1 // pred_check_branch
      %309 = sbr.rel (0) target = $region37
    $region36: #{forward.1} parent=1 // pred_region
      %s311 = ssub.s32 128, 16
      %312 = vsyncadd [#allocation4], %s311
      %s313 = sshll.u32 [#allocation8], 4
      %s314 = int_to_ptr.vmem [resolvable:$true] %s313
      %319 = dma.vmem_to_hbm [thread:$0]  %s314, 16, %s5, [#allocation4], 16, 16, 1
    $region37: #{forward.1} parent=1 // pred_fallthru
      _
    // Predicated region
    $region38: #{forward.1} parent=1 // pred_check
      _
    $region39: #{forward.1} parent=1 // pred_check_branch
      %321 = sbr.rel (0) target = $region41
    $region40: #{forward.1} parent=1 // pred_region
      %322 = dma.done [#allocation4], 128
    $region41: #{forward.1} parent=1 // pred_fallthru
      _
    %323 = vsyncpa [#allocation3], 1
    %324 = vsyncpa [#allocation6], 1
    %325 = vsyncpa [#allocation4], 1

</llo_original>
